<compile_context>
chip_gen: v7x
topology: tpu7x:2x2x1
jax: 0.10.0
libtpu: 0.0.40
codegen_flags: <defaults>
</compile_context>

<pallas_src>
import functools
import math

import jax
import jax.numpy as jnp
from jax.experimental import pallas as pl
from jax.experimental.pallas import tpu as pltpu


_DEFAULT_SCOPED_VMEM = 16 * 1024 * 1024   # most conservative default (v5e)
_MAX_SCOPED_VMEM = 60 * 1024 * 1024       # stay under v7x's 64 MiB physical


def _compiler_params(dim_sem, needed_bytes):
    limit = None
    if needed_bytes > _DEFAULT_SCOPED_VMEM:
        limit = min(int(needed_bytes * 1.25), _MAX_SCOPED_VMEM)
    return pltpu.CompilerParams(dimension_semantics=dim_sem,
                                vmem_limit_bytes=limit)


def _pick_tile(dim, desired, align):
    """Largest t <= desired with dim % t == 0 and t % align == 0, else full dim."""
    t = min(desired, dim)
    t -= t % align
    while t >= align:
        if dim % t == 0:
            return t
        t -= align
    # TODO(synk): pad + masked tail would bound VMEM for huge unaligned dims.
    return dim


# ----------------------------- tiled linear --------------------------------

def _linear_kernel(x_ref, w_ref, b_ref, o_ref, acc_ref):
    k = pl.program_id(2)

    @pl.when(k == 0)
    def _():
        acc_ref[...] = jnp.zeros_like(acc_ref)

    acc_ref[...] += jnp.dot(x_ref[...], w_ref[...],
                            preferred_element_type=jnp.float32)

    @pl.when(k == pl.num_programs(2) - 1)
    def _():
        o_ref[...] = (acc_ref[...] + b_ref[...]).astype(o_ref.dtype)


def linear(x2d, w, b, *, out_dtype=jnp.float32, compute_dtype=jnp.bfloat16,
           tm=512, tn=512, tk=512):
    """y = x2d @ w + b.  x2d: (M, K), w: (K, N), b: (N,) -> (M, N) out_dtype."""
    M, K = x2d.shape
    N = w.shape[1]
    tm = _pick_tile(M, tm, 8)
    tn = _pick_tile(N, tn, 128)
    tk = _pick_tile(K, tk, 128)
    grid = (M // tm, N // tn, K // tk)

    x_c = x2d if x2d.dtype == compute_dtype else x2d.astype(compute_dtype)
    w_c = w if w.dtype == compute_dtype else w.astype(compute_dtype)
    b2d = b.reshape(1, N).astype(jnp.float32)

    csize = jnp.dtype(compute_dtype).itemsize
    osize = jnp.dtype(out_dtype).itemsize
    needed = (2 * (tm * tk + tk * tn) * csize      # double-buffered x/w blocks
              + 2 * tm * tn * osize                # double-buffered out block
              + tm * tn * 4 + 2 * tn * 4)          # f32 accumulator + bias

    return pl.pallas_call(
        _linear_kernel,
        out_shape=jax.ShapeDtypeStruct((M, N), out_dtype),
        grid=grid,
        in_specs=[
            pl.BlockSpec((tm, tk), lambda i, j, k: (i, k)),
            pl.BlockSpec((tk, tn), lambda i, j, k: (k, j)),
            pl.BlockSpec((1, tn), lambda i, j, k: (0, j)),
        ],
        out_specs=pl.BlockSpec((tm, tn), lambda i, j, k: (i, j)),
        scratch_shapes=[pltpu.VMEM((tm, tn), jnp.float32)],
        compiler_params=_compiler_params(
            ("parallel", "parallel", "arbitrary"), needed),
    )(x_c, w_c, b2d)


# --------------------------- attention kernel -------------------------------

def _attn_kernel(q_ref, k_ref, v_ref, o_ref, m_ref, l_ref, acc_ref, *,
                 heads, d_hidden):
    ki = pl.program_id(2)

    @pl.when(ki == 0)
    def _():
        m_ref[...] = jnp.full_like(m_ref, -jnp.inf)
        l_ref[...] = jnp.zeros_like(l_ref)
        acc_ref[...] = jnp.zeros_like(acc_ref)

    q = q_ref[0]   # (tq, H*Dh) bf16 (1/sqrt(d_hidden) already folded into W_q)
    k = k_ref[0]   # (tk, H*Dh)
    v = v_ref[0]   # (tk, H*Dh)

    # Static (unrolled) loop over heads; all slices are static lane slices.
    # TODO(synk): at Dh=16..64 the QK^T contraction is architecturally <25% MXU
    # efficient on the 256-wide MXUs (v6e/v7x); this is not a kernel bug.
    for h in range(heads):
        lo, hi = h * d_hidden, (h + 1) * d_hidden
        qh, kh, vh = q[:, lo:hi], k[:, lo:hi], v[:, lo:hi]

        # QK^T contracting last axes directly (no explicit transpose).
        s = jax.lax.dot_general(qh, kh, (((1,), (1,)), ((), ())),
                                preferred_element_type=jnp.float32)  # (tq, tk)
        # TODO(synk): mask would be applied here: s += -1e9 * mask_block

        m_prev = m_ref[h]                                            # (tq, 1)
        m_new = jnp.maximum(m_prev, jnp.max(s, axis=-1, keepdims=True))
        alpha = jnp.exp(m_prev - m_new)
        p = jnp.exp(s - m_new)
        l_ref[h] = alpha * l_ref[h] + jnp.sum(p, axis=-1, keepdims=True)
        acc_ref[:, lo:hi] = alpha * acc_ref[:, lo:hi] + jnp.dot(
            p.astype(vh.dtype), vh, preferred_element_type=jnp.float32)
        m_ref[h] = m_new

    @pl.when(ki == pl.num_programs(2) - 1)
    def _():
        for h in range(heads):
            lo, hi = h * d_hidden, (h + 1) * d_hidden
            inv = pl.reciprocal(l_ref[h], approx=False)   # exact (accuracy)
            o_ref[0, :, lo:hi] = (acc_ref[:, lo:hi] * inv).astype(o_ref.dtype)


def dot_product_attention(q, k, v, heads, d_hidden, *, out_dtype=None,
                          tq=256, tk=512):
    """q/k/v: (B, L, H*Dh), head-interleaved on the last axis (bf16).
    Returns the attention output in the same lane-dense (B, Lq, H*Dh) layout."""
    B, Lq, HD = q.shape
    Lk = k.shape[1]
    out_dtype = out_dtype or q.dtype
    tq = _pick_tile(Lq, tq, 8)
    tk = _pick_tile(Lk, tk, 8)
    grid = (B, Lq // tq, Lk // tk)

    csize = jnp.dtype(q.dtype).itemsize
    needed = (2 * (tq * HD * csize + 2 * tk * HD * csize
                   + tq * HD * jnp.dtype(out_dtype).itemsize)
              + (2 * heads * tq + tq * HD) * 4      # m/l/acc scratch
              + 4 * tq * tk * 4)                    # score/exp intermediates

    kernel = functools.partial(_attn_kernel, heads=heads, d_hidden=d_hidden)
    return pl.pallas_call(
        kernel,
        out_shape=jax.ShapeDtypeStruct((B, Lq, HD), out_dtype),
        grid=grid,
        in_specs=[
            pl.BlockSpec((1, tq, HD), lambda b, qi, ki: (b, qi, 0)),
            pl.BlockSpec((1, tk, HD), lambda b, qi, ki: (b, ki, 0)),
            pl.BlockSpec((1, tk, HD), lambda b, qi, ki: (b, ki, 0)),
        ],
        out_specs=pl.BlockSpec((1, tq, HD), lambda b, qi, ki: (b, qi, 0)),
        scratch_shapes=[
            pltpu.VMEM((heads, tq, 1), jnp.float32),   # running max m
            pltpu.VMEM((heads, tq, 1), jnp.float32),   # running sum l
            pltpu.VMEM((tq, HD), jnp.float32),         # f32 output accumulator
        ],
        compiler_params=_compiler_params(
            ("parallel", "parallel", "arbitrary"), needed),
    )(q, k, v)


# --------------------------- module-level wrapper ---------------------------

def split_heads(x, heads):
    # (B, L, H*Dh) -> (B, H, L, Dh)   [matches reshape_tensor(..., flag=True)]
    B, L, HD = x.shape
    return x.reshape(B, L, heads, HD // heads).transpose(0, 2, 1, 3)


def merge_heads(x):
    # (B, H, L, Dh) -> (B, L, H*Dh)   [matches reshape_tensor(..., flag=False)]
    B, H, L, Dh = x.shape
    return x.transpose(0, 2, 1, 3).reshape(B, L, H * Dh)


def prepare_params(params, d_hidden, compute_dtype=jnp.bfloat16):
    """One-time transform: cast weights to the MXU compute dtype and fold
    1/sqrt(d_hidden) into W_q / b_q so the attention kernel does no scaling."""
    scale = 1.0 / math.sqrt(float(d_hidden))
    p = {}
    p["wq"] = (params["wq"] * scale).astype(compute_dtype)
    p["bq"] = (params["bq"] * scale).astype(jnp.float32)
    p["wk"] = params["wk"].astype(compute_dtype)
    p["bk"] = params["bk"].astype(jnp.float32)
    p["wv"] = params["wv"].astype(compute_dtype)
    p["bv"] = params["bv"].astype(jnp.float32)
    p["wo"] = params["wo"].astype(compute_dtype)
    p["bo"] = params["bo"].astype(jnp.float32)
    return p


def multi_headed_attention(prepped, queries, keys, values, heads, d_hidden,
                           compute_dtype=jnp.bfloat16):
    B, Lq, _ = queries.shape
    d_model = prepped["wo"].shape[1]

    def proj(x, w, b):
        B_, L_, Din = x.shape
        y = linear(x.reshape(B_ * L_, Din), w, b,
                   out_dtype=compute_dtype, compute_dtype=compute_dtype)
        return y.reshape(B_, L_, w.shape[1])

    # Projections stay in (B, L, H*Dh) layout: no split_heads HBM transpose.
    q_p = proj(queries, prepped["wq"], prepped["bq"])
    k_p = proj(keys, prepped["wk"], prepped["bk"])
    v_p = proj(values, prepped["wv"], prepped["bv"])

    attn = dot_product_attention(q_p, k_p, v_p, heads, d_hidden)  # (B,Lq,H*Dh)

    out = linear(attn.reshape(B * Lq, heads * d_hidden),
                 prepped["wo"], prepped["bo"],
                 out_dtype=jnp.float32,
                 compute_dtype=compute_dtype).reshape(B, Lq, d_model)

    # Second return value matches torch: per-head output in (B, H, Lq, Dh).
    out_heads = split_heads(attn.astype(jnp.float32), heads)
    return out, out_heads


# ------------------------------ reference (JAX) -----------------------------

def reference_mha(params, queries, keys, values, heads, d_hidden):
    def proj(x, w, b):
        return x @ w + b
    q = split_heads(proj(queries, params["wq"], params["bq"]), heads)
    k = split_heads(proj(keys, params["wk"], params["bk"]), heads)
    v = split_heads(proj(values, params["wv"], params["bv"]), heads)
    scores = jnp.einsum("bhqd,bhkd->bhqk", q, k) / jnp.sqrt(jnp.float32(d_hidden))
    attn = jax.nn.softmax(scores, axis=-1)
    out_heads = jnp.einsum("bhqk,bhkd->bhqd", attn, v)
    out = merge_heads(out_heads) @ params["wo"] + params["bo"]
    return out, out_heads


# ---------------------------------- main ------------------------------------

def init_params(key, d_query, d_key, d_values, d_hidden, h, d_model):
    ks = jax.random.split(key, 8)

    def lin_init(kw, kb, d_in, d_out):
        bound = 1.0 / jnp.sqrt(jnp.float32(d_in))
        w = jax.random.uniform(kw, (d_in, d_out), jnp.float32, -bound, bound)
        b = jax.random.uniform(kb, (d_out,), jnp.float32, -bound, bound)
        return w, b

    wq, bq = lin_init(ks[0], ks[1], d_query, d_hidden * h)
    wk, bk = lin_init(ks[2], ks[3], d_key, d_hidden * h)
    wv, bv = lin_init(ks[4], ks[5], d_values, d_hidden * h)
    wo, bo = lin_init(ks[6], ks[7], d_hidden * h, d_model)
    return dict(wq=wq, bq=bq, wk=wk, bk=bk, wv=wv, bv=bv, wo=wo, bo=bo)


if __name__ == "__main__":
    B, Lq, Lk = 2, 8, 8
    h, d_hidden = 4, 16
    d_query = d_key = d_values = 32
    d_model = 32

    key = jax.random.PRNGKey(0)
    kp, kq, kk, kv = jax.random.split(key, 4)
    params = init_params(kp, d_query, d_key, d_values, d_hidden, h, d_model)
    prepped = prepare_params(params, d_hidden)

    queries = jax.random.normal(kq, (B, Lq, d_query), jnp.float32)
    keys = jax.random.normal(kk, (B, Lk, d_key), jnp.float32)
    values = jax.random.normal(kv, (B, Lk, d_values), jnp.float32)

    out, out_heads = multi_headed_attention(
        prepped, queries, keys, values, h, d_hidden)
    out = jax.block_until_ready(out)
    out_heads = jax.block_until_ready(out_heads)

    ref_out, ref_heads = reference_mha(
        params, queries, keys, values, h, d_hidden)

    assert out.shape == (B, Lq, d_model)
    assert out_heads.shape == (B, h, Lq, d_hidden)
    # bf16 MXU operands with f32 accumulation -> ~1e-2 relative error budget.
    assert jnp.allclose(out, ref_out, atol=5e-2, rtol=5e-2)
    assert jnp.allclose(out_heads, ref_heads, atol=5e-2, rtol=5e-2)

    print("KERNEL_OK")
</pallas_src>

<mosaic_0001>
module attributes {stable_mosaic.version = 11 : i64} {
  func.func @_linear_kernel(%arg0: i32, %arg1: i32, %arg2: i32, %arg3: memref<16x32xbf16, #tpu.memory_space<vmem>>, %arg4: memref<32x64xbf16, #tpu.memory_space<vmem>>, %arg5: memref<1x64xf32, #tpu.memory_space<vmem>>, %arg6: memref<16x64xbf16, #tpu.memory_space<vmem>>, %arg7: memref<16x64xf32, #tpu.memory_space<vmem>>) attributes {dimension_semantics = [#tpu.dimension_semantics<parallel>, #tpu.dimension_semantics<parallel>, #tpu.dimension_semantics<arbitrary>], iteration_bounds = array<i64: 1, 1, 1>, scalar_prefetch = 0 : i64, scratch_operands = 1 : i64, tpu.core_type = #tpu.core_type<tc>, window_params = [{transform_indices = @transform_0, window_bounds = array<i64: 16, 32>}, {transform_indices = @transform_1, window_bounds = array<i64: 32, 64>}, {transform_indices = @transform_2, window_bounds = array<i64: 1, 64>}, {transform_indices = @transform_3, window_bounds = array<i64: 16, 64>}]} {
    %c0_i32 = arith.constant 0 : i32
    %0 = arith.cmpi eq, %arg2, %c0_i32 : i32
    %1 = arith.extui %0 : i1 to i32
    %c0_i32_0 = arith.constant 0 : i32
    %2 = arith.cmpi ne, %1, %c0_i32_0 : i32
    scf.if %2 {
      %cst_10 = arith.constant 0.000000e+00 : f32
      %12 = vector.broadcast %cst_10 : f32 to vector<16x64xf32>
      %c0_11 = arith.constant 0 : index
      %c0_12 = arith.constant 0 : index
      %13 = vector.load %arg7[%c0_11, %c0_12] : memref<16x64xf32, #tpu.memory_space<vmem>>, vector<16x64xf32>
      tpu.vector_store %arg7[%c0_11, %c0_12], %12 {strides = array<i32>} : memref<16x64xf32, #tpu.memory_space<vmem>>, vector<16x64xf32>,
    } else {
    }
    %c0 = arith.constant 0 : index
    %c0_1 = arith.constant 0 : index
    %3 = vector.load %arg7[%c0, %c0_1] : memref<16x64xf32, #tpu.memory_space<vmem>>, vector<16x64xf32>
    %c0_2 = arith.constant 0 : index
    %c0_3 = arith.constant 0 : index
    %4 = vector.load %arg3[%c0_2, %c0_3] : memref<16x32xbf16, #tpu.memory_space<vmem>>, vector<16x32xbf16>
    %c0_4 = arith.constant 0 : index
    %c0_5 = arith.constant 0 : index
    %5 = vector.load %arg4[%c0_4, %c0_5] : memref<32x64xbf16, #tpu.memory_space<vmem>>, vector<32x64xbf16>
    %cst = arith.constant dense<0.000000e+00> : vector<16x64xf32>
    %6 = tpu.matmul %4, %5, %cst {dimension_numbers = #tpu.dot_dimension_numbers<[1], [0], [0], [1], [0, 0, 1, 1], [], []>} : vector<16x32xbf16>, vector<32x64xbf16>, vector<16x64xf32> -> vector<16x64xf32>
    %7 = arith.addf %3, %6 : vector<16x64xf32>
    %c0_6 = arith.constant 0 : index
    %c0_7 = arith.constant 0 : index
    %8 = vector.load %arg7[%c0_6, %c0_7] : memref<16x64xf32, #tpu.memory_space<vmem>>, vector<16x64xf32>
    tpu.vector_store %arg7[%c0_6, %c0_7], %7 {strides = array<i32>} : memref<16x64xf32, #tpu.memory_space<vmem>>, vector<16x64xf32>,
    %c0_i32_8 = arith.constant 0 : i32
    %9 = arith.cmpi eq, %arg2, %c0_i32_8 : i32
    %10 = arith.extui %9 : i1 to i32
    %c0_i32_9 = arith.constant 0 : i32
    %11 = arith.cmpi ne, %10, %c0_i32_9 : i32
    scf.if %11 {
      %c0_10 = arith.constant 0 : index
      %c0_11 = arith.constant 0 : index
      %12 = vector.load %arg7[%c0_10, %c0_11] : memref<16x64xf32, #tpu.memory_space<vmem>>, vector<16x64xf32>
      %c0_12 = arith.constant 0 : index
      %c0_13 = arith.constant 0 : index
      %13 = vector.load %arg5[%c0_12, %c0_13] : memref<1x64xf32, #tpu.memory_space<vmem>>, vector<1x64xf32>
      %14 = vector.broadcast %13 : vector<1x64xf32> to vector<16x64xf32>
      %15 = arith.addf %12, %14 : vector<16x64xf32>
      %16 = arith.truncf %15 : vector<16x64xf32> to vector<16x64xbf16>
      %c0_14 = arith.constant 0 : index
      %c0_15 = arith.constant 0 : index
      %17 = vector.load %arg6[%c0_14, %c0_15] : memref<16x64xbf16, #tpu.memory_space<vmem>>, vector<16x64xbf16>
      tpu.vector_store %arg6[%c0_14, %c0_15], %16 {strides = array<i32>} : memref<16x64xbf16, #tpu.memory_space<vmem>>, vector<16x64xbf16>,
    } else {
    }
    return
  }
  func.func @transform_0(%arg0: i32, %arg1: i32, %arg2: i32) -> (i32, i32) {
    %c0_i32 = arith.constant 0 : i32
    return %arg0, %arg2 : i32, i32
  }
  func.func @transform_1(%arg0: i32, %arg1: i32, %arg2: i32) -> (i32, i32) {
    %c0_i32 = arith.constant 0 : i32
    return %arg2, %arg1 : i32, i32
  }
  func.func @transform_2(%arg0: i32, %arg1: i32, %arg2: i32) -> (i32, i32) {
    %c0_i32 = arith.constant 0 : i32
    %c0_i32_0 = arith.constant 0 : i32
    return %c0_i32, %arg1 : i32, i32
  }
  func.func @transform_3(%arg0: i32, %arg1: i32, %arg2: i32) -> (i32, i32) {
    %c0_i32 = arith.constant 0 : i32
    return %arg0, %arg1 : i32, i32
  }
}

</mosaic_0001>

<llo_original>
// kernel: tpu_custom_call.1
$region0: #{tpu_custom_call.1}
  #allocation0 [shape = 'u32[]', space=smem, size = 0x4, offset = 0x4, fixed_abs, tag = 'smem constant byte address 0x4 - core index']
  #allocation1 [shape = 'u32[144,128]{1,0:T(1,128)}', space=vmem, size = 0x12000, scoped, tag = 'internal scratch']
  #allocation2 [shape = 'f32[16,64]{1,0:T(8,128)}', space=vmem, size = 0x2000, scoped, tag = 'scratch operand']
  %s0 = inlined_call_operand.hbm [shape: bf16[16,32], index: 0, kind: input, shape index: {}]
  %s1 = inlined_call_operand.hbm [shape: bf16[32,64], index: 1, kind: input, shape index: {}]
  %s2 = inlined_call_operand.vmem [shape: f32[1,64], index: 2, kind: input, shape index: {}]
  %s3 = inlined_call_operand.hbm [shape: bf16[16,64], index: 3, kind: output, shape index: {}]
  %s4 = sld [smem:[#allocation0]]
  $region38: #{tpu_custom_call.1} parent=0
    _
  %s6 = ssub.s32 1, %s4
  %s7 = scalar_select 0, %s6, %s4
  $region1: #{tpu_custom_call.1} parent=0
    #allocation3 [shape = 'u8[4096]{0}', space=vmem, size = 0x1000, scoped, tag = 'input window, operand 0, single buffered']
    #allocation4 [shape = 's32[1]{0}', space=sflag, size = 0x4, scoped, tag = 'scoped memory for tpu_custom_call.1']
    #allocation5 [shape = 's32[1]{0}', space=sflag, size = 0x4, scoped, tag = 'scoped memory for tpu_custom_call.1']
    #allocation6 [shape = 'u8[8192]{0}', space=vmem, size = 0x2000, scoped, tag = 'input window, operand 1, single buffered']
    #allocation7 [shape = 's32[1]{0}', space=sflag, size = 0x4, scoped, tag = 'scoped memory for tpu_custom_call.1']
    #allocation8 [shape = 'u8[4096]{0}', space=vmem, size = 0x1000, scoped, tag = 'output window, operand 0, single buffered']
    %8 = vsyncpa [#allocation4], 0
    %9 = vsyncpa [#allocation7], 0
    %10 = vsyncpa [#allocation5], 0
    // Predicated region
    $region2: #{tpu_custom_call.1} parent=1 // pred_check
      _
    $region3: #{tpu_custom_call.1} parent=1 // pred_check_branch
      %12 = sbr.rel (0) target = $region5
    $region4: #{tpu_custom_call.1} parent=1 // pred_region
      %s14 = ssub.s32 128, 128
      %15 = vsyncadd [#allocation4], %s14
      %s16 = sshll.u32 [#allocation3], 4
      %s17 = int_to_ptr.vmem [resolvable:$true] %s16
      %22 = dma.hbm_to_vmem [thread:$0]  %s0, 128, %s17, [#allocation4], 64, 64, 4
    $region5: #{tpu_custom_call.1} parent=1 // pred_fallthru
      _
    // Predicated region
    $region6: #{tpu_custom_call.1} parent=1 // pred_check
      _
    $region7: #{tpu_custom_call.1} parent=1 // pred_check_branch
      %24 = sbr.rel (0) target = $region9
    $region8: #{tpu_custom_call.1} parent=1 // pred_region
      %s26 = ssub.s32 256, 256
      %27 = vsyncadd [#allocation7], %s26
      %s28 = sshll.u32 [#allocation6], 4
      %s29 = int_to_ptr.vmem [resolvable:$true] %s28
      %34 = dma.hbm_to_vmem [thread:$0]  %s1, 256, %s29, [#allocation7], 64, 64, 4
    $region9: #{tpu_custom_call.1} parent=1 // pred_fallthru
      _
    // Predicated region
    $region10: #{tpu_custom_call.1} parent=1 // pred_check
      _
    $region11: #{tpu_custom_call.1} parent=1 // pred_check_branch
      %36 = sbr.rel (0) target = $region13
    $region12: #{tpu_custom_call.1} parent=1 // pred_region
      _
    $region13: #{tpu_custom_call.1} parent=1 // pred_fallthru
      _
    // Predicated region
    $region14: #{tpu_custom_call.1} parent=1 // pred_check
      _
    $region15: #{tpu_custom_call.1} parent=1 // pred_check_branch
      %38 = sbr.rel (0) target = $region17
    $region16: #{tpu_custom_call.1} parent=1 // pred_region
      %39 = dma.done [#allocation4], 128
    $region17: #{tpu_custom_call.1} parent=1 // pred_fallthru
      _
    // Predicated region
    $region18: #{tpu_custom_call.1} parent=1 // pred_check
      _
    $region19: #{tpu_custom_call.1} parent=1 // pred_check_branch
      %41 = sbr.rel (0) target = $region21
    $region20: #{tpu_custom_call.1} parent=1 // pred_region
      %42 = dma.done [#allocation7], 256
    $region21: #{tpu_custom_call.1} parent=1 // pred_fallthru
      _
    %p44 = scmp.eq.s32.totalorder 0, 0
    // Predicated region
    $region22: #{tpu_custom_call.1} parent=1 // pred_check
      %p45 = pneg %p44
    $region23: #{tpu_custom_call.1} parent=1 // pred_check_branch
      %47 = sbr.rel (%p45) target = $region25
    $region24: #{tpu_custom_call.1} parent=1 // pred_region
      %vm48 = vcmask 523264
      %49 = vst.msk [vmem:[#allocation2] sm:$0xff] %vm48, 0.0
      %50 = vst.msk [vmem:[#allocation2 + $0x8] sm:$0xff] %vm48, 0.0
    $region25: #{tpu_custom_call.1} parent=1 // pred_fallthru
      _
    %v51 = vld [vmem:[#allocation2] sm:$0xff]
    %v52 = vld [vmem:[#allocation2 + $0x8] sm:$0xff]
    %v53 = vld [vmem:[#allocation3] sm:$0xf]
    %v54 = vld [vmem:[#allocation3 + $0x4] sm:$0xf]
    %v55 = vld [vmem:[#allocation6] sm:$0xf]
    %v56 = vld [vmem:[#allocation6 + $0x4] sm:$0xf]
    %v57 = vld [vmem:[#allocation6 + $0x8] sm:$0xf]
    %v58 = vld [vmem:[#allocation6 + $0xc] sm:$0xf]
    %v61 = vunpack.c.l.b16 %v53
    %v62 = vunpack.c.l.b16 %v54
    %v63 = vpack.c.b16 %v62, %v61
    %v68 = vunpack.c.l.b16 %v55
    %v69 = vunpack.c.l.b16 %v56
    %v70 = vunpack.c.l.b16 %v57
    %v71 = vunpack.c.l.b16 %v58
    %v72 = vpack.c.b16 %v69, %v68
    %v73 = vpack.c.b16 %v71, %v70
    %vm76 = vcmask 261120
    %v78 = vsel %vm76, %v63, 0
    %80 = vmatprep.subr.bf16.mxu0 0
    %81 = vmatpush1.bf16.msra.mxu0 %v72
    %82 = vmatprep.subr.bf16.mxu0 0
    %83 = vmatpush1.bf16.msra.mxu0 %v73
    %84 = vmatprep.subr.bf16.mxu0 0
    %85 = vmatpush1.bf16.msra.mxu0 0
    %86 = vmatprep.subr.bf16.mxu0 0
    %87 = vmatpush1.bf16.msra.mxu0 0
    %88 = vmatprep.subr.bf16.mxu0 0
    %89 = vmatpush1.bf16.msra.mxu0 0
    %90 = vmatprep.subr.bf16.mxu0 0
    %91 = vmatpush1.bf16.msra.mxu0 0
    %92 = vmatprep.subr.bf16.mxu0 0
    %93 = vmatpush1.bf16.msra.mxu0 0
    %94 = vmatprep.subr.bf16.mxu0 0
    %95 = vmatpush1.bf16.msra.mxu0 0
    %96 = vmatprep.subr.bf16.mxu0 0
    %97 = vmatpush1.bf16.msra.mxu0 0
    %98 = vmatprep.subr.bf16.mxu0 0
    %99 = vmatpush1.bf16.msra.mxu0 0
    %100 = vmatprep.subr.bf16.mxu0 0
    %101 = vmatpush1.bf16.msra.mxu0 0
    %102 = vmatprep.subr.bf16.mxu0 0
    %103 = vmatpush1.bf16.msra.mxu0 0
    %104 = vmatprep.subr.bf16.mxu0 0
    %105 = vmatpush1.bf16.msra.mxu0 0
    %106 = vmatprep.subr.bf16.mxu0 0
    %107 = vmatpush1.bf16.msra.mxu0 0
    %108 = vmatprep.subr.bf16.mxu0 0
    %109 = vmatpush1.bf16.msra.mxu0 0
    %110 = vmatprep.subr.bf16.mxu0 0
    %111 = vmatpush1.bf16.msra.mxu0 0
    %112 = vmatprep.mubr.bf16.mxu0 0
    %113 = vmatmul.mubr.bf16.gmra.mrb[0].mxu0 %v78
    %v114 = vpop.f32.mrb[0].mxu0
    %v115 = vadd.f32 0.0, %v114
    %v116 = vpop.f32.mrb[0].mxu0
    %v117 = vpop.f32.mrb[0].mxu0
    %v118 = vadd.f32 0.0, %v117
    %v119 = vpop.f32.mrb[0].mxu0
    %120 = vdwg.mxu0
    %v121 = vadd.f32 %v51, %v115
    %v122 = vadd.f32 %v52, %v118
    %vm123 = vcmask 523264
    %124 = vst.msk [vmem:[#allocation2] sm:$0xff] %vm123, %v121
    %125 = vst.msk [vmem:[#allocation2 + $0x8] sm:$0xff] %vm123, %v122
    // Predicated region
    $region26: #{tpu_custom_call.1} parent=1 // pred_check
      %p126 = pneg %p44
    $region27: #{tpu_custom_call.1} parent=1 // pred_check_branch
      %128 = sbr.rel (%p126) target = $region29
    $region28: #{tpu_custom_call.1} parent=1 // pred_region
      %v129 = vld [vmem:[#allocation2] sm:$0xff]
      %v130 = vld [vmem:[#allocation2 + $0x8] sm:$0xff]
      %v131 = vld [vmem:[%s2] sm:$0x1]
      %v133 = vlaneseq
      %v134 = vshrl.u32 %v133, 7
      %v135 = vsub.s32 0, %v134
      %v136 = vrot.slane %v131, %v135
      %v138 = vadd.f32 %v129, %v136
      %v139 = vadd.f32 %v130, %v136
      %v140 = vpack.c.bf16 %v139, %v138
      %v142 = vunpack.c.l.b16 %v140
      %v143 = vunpack.c.h.b16 %v140
      %v144 = vpack.c.b16 %v142, %v142
      %v145 = vpack.c.b16 %v143, %v143
      %vm148 = vcmask 519168
      %149 = vst.msk [vmem:[#allocation8] sm:$0xf] %vm148, %v144
      %150 = vst.msk [vmem:[#allocation8 + $0x4] sm:$0xf] %vm148, %v145
    $region29: #{tpu_custom_call.1} parent=1 // pred_fallthru
      _
    // Predicated region
    $region30: #{tpu_custom_call.1} parent=1 // pred_check
      _
    $region31: #{tpu_custom_call.1} parent=1 // pred_check_branch
      %152 = sbr.rel (0) target = $region33
    $region32: #{tpu_custom_call.1} parent=1 // pred_region
      %s154 = ssub.s32 128, 128
      %155 = vsyncadd [#allocation5], %s154
      %s156 = sshll.u32 [#allocation8], 4
      %s157 = int_to_ptr.vmem [resolvable:$true] %s156
      %162 = dma.vmem_to_hbm [thread:$0]  %s157, 128, %s3, [#allocation5], 64, 64, 4
    $region33: #{tpu_custom_call.1} parent=1 // pred_fallthru
      _
    // Predicated region
    $region34: #{tpu_custom_call.1} parent=1 // pred_check
      _
    $region35: #{tpu_custom_call.1} parent=1 // pred_check_branch
      %164 = sbr.rel (0) target = $region37
    $region36: #{tpu_custom_call.1} parent=1 // pred_region
      %165 = dma.done [#allocation5], 128
    $region37: #{tpu_custom_call.1} parent=1 // pred_fallthru
      _
    %166 = vsyncpa [#allocation4], 1
    %167 = vsyncpa [#allocation7], 1
    %168 = vsyncpa [#allocation5], 1

</llo_original>
